<compile_context>
chip_gen: v7x
topology: tpu7x:2x2x1
jax: 0.10.0
libtpu: 0.0.40
codegen_flags: <defaults>
</compile_context>

<pallas_src>
import functools
import math

import jax
import jax.numpy as jnp
from jax.experimental import pallas as pl
from jax.experimental.pallas import tpu as pltpu


def _round_up(x, m):
    return (x + m - 1) // m * m


def _vmem_capacity_bytes(default=64 * 1024 * 1024):
    try:
        info = pltpu.get_tpu_info()
        return int(getattr(info, "vmem_capacity_bytes", default))
    except Exception:
        return default


def egconv_kernel(coef_ref, adj_ref, feat_ref, w_ref, bias_ref, out_ref,
                  g_ref, comb_ref, *, n_pad, tile_m, k_last):
    """Grid = (k+1 steps, node row tiles), step axis outermost.

    coef_ref : SMEM (k+1,)               c_s = lambda^s / s!   (scalar prefetch)
    adj_ref  : VMEM (TM, Npad) int8      adjacency row block (in-neighbor matrix)
    feat_ref : VMEM (TM, Fpad) f32       input node features (tile; fetched at s==0)
    w_ref    : VMEM (Fpad, Fout) bf16    fc weight, padded & pre-transposed (resident)
    bias_ref : VMEM (1, Fout) f32        (k+1) * fc bias
    out_ref  : VMEM (TM, Fout) f32       written only at s == k
    g_ref    : VMEM (2, Npad, Fpad) bf16 ping-pong buffer holding D^-1/2 * feat_s
    comb_ref : VMEM (Npad, Fpad) f32     running  sum_s c_s * feat_s
    """
    s = pl.program_id(0)                       # propagation step 0..k
    i = pl.program_id(1)                       # node row tile
    row0 = pl.multiple_of(i * tile_m, 128)
    rows = pl.ds(row0, tile_m)
    cur = s & 1                                # ping-pong slot written this step
    prev = 1 - cur                             # slot holding D^-1/2 * feat_{s-1}

    # D^-1/2 for this row tile, recomputed every visit from the adjacency block
    # already resident in VMEM (cheaper than a lane-padded (N,1) scratch).
    # Chunked reduction avoids materializing a full-width f32 copy of the block.
    deg = jnp.zeros((tile_m, 1), jnp.float32)
    col = 0
    while col < n_pad:                         # static Python loop (n_pad static)
        width = min(1024, n_pad - col)
        deg = deg + jnp.sum(adj_ref[:, col:col + width].astype(jnp.float32),
                            axis=1, keepdims=True)
        col += width
    nrm = jax.lax.rsqrt(jnp.maximum(deg, 1.0))          # clamp(min=1) ** -0.5

    @pl.when(s == 0)
    def _init():
        f0 = feat_ref[...]                              # (TM, Fpad) f32, tile i
        comb_ref[rows, :] = coef_ref[0] * f0
        g_ref[cur, rows, :] = (nrm * f0).astype(g_ref.dtype)

    @pl.when(s > 0)
    def _propagate():
        # int8 adjacency from HBM, cast to bf16 here; bf16 x bf16 -> f32 on MXU.
        adj_bf = adj_ref[...].astype(jnp.bfloat16)
        t = jnp.dot(adj_bf, g_ref[prev], preferred_element_type=jnp.float32)
        h = nrm * t                                     # feat_s for this row tile
        comb_ref[rows, :] = comb_ref[rows, :] + coef_ref[s] * h
        g_ref[cur, rows, :] = (nrm * h).astype(g_ref.dtype)

    # Project only on the final step: the out BlockSpec freezes its block index
    # until s == k, so only these final, fully-written tiles reach HBM.
    @pl.when(s == k_last)
    def _project():
        proj = jnp.dot(comb_ref[rows, :].astype(jnp.bfloat16), w_ref[...],
                       preferred_element_type=jnp.float32)
        out_ref[...] = proj + bias_ref[...]


def egconv_forward(adj, feat, weight, bias, lam, k, *, tile_m=512):
    """adj: (N,N), feat: (N,Fin), weight: (Fout,Fin), bias: (Fout,), lam scalar."""
    n, fin = feat.shape
    fout, fin_w = weight.shape
    assert fin_w == fin

    lane = 128
    f32, bf16 = jnp.float32, jnp.bfloat16

    fin_pad = _round_up(fin, lane)
    fout_pad = _round_up(fout, lane)

    # Node tiling: distribute padding across tiles (keeps total padding < 128
    # per tile) instead of rounding N up to a whole extra tile_m.
    n_pad = _round_up(n, lane)
    tile_m = max(lane, min(_round_up(tile_m, lane), n_pad))
    n_tiles = -(-n_pad // tile_m)
    tile_m = _round_up(-(-n_pad // n_tiles), lane)
    n_pad = n_tiles * tile_m

    # Pad to lane-dense shapes. Adjacency (0/1 values, exact) goes int8 in HBM.
    adj_p = jnp.zeros((n_pad, n_pad), jnp.int8).at[:n, :n].set(adj.astype(jnp.int8))
    feat_p = jnp.zeros((n_pad, fin_pad), f32).at[:n, :fin].set(feat.astype(f32))
    # fc weight: padded, pre-transposed, bf16 (fast MXU path, half the VMEM).
    w_p = jnp.zeros((fin_pad, fout_pad), bf16).at[:fin, :fout].set(
        weight.astype(f32).T.astype(bf16))
    # fc() is applied to every one of the k+1 terms -> bias is added (k+1) times.
    bias_p = jnp.zeros((1, fout_pad), f32).at[0, :fout].set(bias.astype(f32) * (k + 1))

    # c_s = lambda^s / s!
    lam = jnp.asarray(lam, f32).reshape(())
    inv_fact = jnp.asarray([1.0 / math.factorial(j) for j in range(k + 1)], f32)
    coeffs = (lam ** jnp.arange(k + 1, dtype=f32)) * inv_fact          # (k+1,)

    last_s = k

    # VMEM estimate (double-buffered pipeline blocks + resident scratch + temps).
    est = (2 * tile_m * n_pad * 1          # adj row block, int8, 2 buffers
           + 2 * tile_m * fin_pad * 4      # feat tile, 2 buffers
           + 2 * fin_pad * fout_pad * 2    # W^T (bf16)
           + 2 * 8 * fout_pad * 4          # bias (sublane padded)
           + 2 * tile_m * fout_pad * 4     # out tile, 2 buffers
           + 2 * n_pad * fin_pad * 2       # g ping-pong scratch (bf16)
           + n_pad * fin_pad * 4           # comb accumulator (f32)
           + tile_m * n_pad * 2            # transient bf16 cast of the adj block
           + 4 * tile_m * max(fin_pad, 1024) * 4)  # misc f32 temporaries
    cap = _vmem_capacity_bytes()
    vmem_limit = int(min(max(32 * 1024 * 1024, int(est * 1.25)), (cap * 4) // 5))

    grid_spec = pltpu.PrefetchScalarGridSpec(
        num_scalar_prefetch=1,                      # coeffs -> SMEM
        grid=(k + 1, n_tiles),
        in_specs=[
            # adjacency row block (int8), streamed once per step.
            pl.BlockSpec((tile_m, n_pad), lambda s, i, c: (i, 0)),
            # input features: per-tile block, only advanced while s == 0
            # (frozen to block 0 afterwards -> no resident full feature matrix).
            pl.BlockSpec((tile_m, fin_pad),
                         lambda s, i, c: (jnp.where(s == 0, i, 0), 0)),
            # W^T (bf16), resident.
            pl.BlockSpec((fin_pad, fout_pad), lambda s, i, c: (0, 0)),
            # (k+1) * bias, resident.
            pl.BlockSpec((1, fout_pad), lambda s, i, c: (0, 0)),
        ],
        # Freeze the output block index to 0 until the last step so the only
        # HBM writebacks are the final, correct per-tile output blocks.
        out_specs=pl.BlockSpec(
            (tile_m, fout_pad),
            lambda s, i, c: (jnp.where(s == last_s, i, 0), 0)),
        scratch_shapes=[
            pltpu.VMEM((2, n_pad, fin_pad), bf16),   # ping-pong D^-1/2 * feat_s
            pltpu.VMEM((n_pad, fin_pad), f32),       # comb accumulator
        ],
    )

    out_p = pl.pallas_call(
        functools.partial(egconv_kernel, n_pad=n_pad, tile_m=tile_m, k_last=last_s),
        out_shape=jax.ShapeDtypeStruct((n_pad, fout_pad), f32),
        grid_spec=grid_spec,
        compiler_params=pltpu.CompilerParams(
            dimension_semantics=("arbitrary", "arbitrary"),
            vmem_limit_bytes=vmem_limit),
    )(coeffs, adj_p, feat_p, w_p, bias_p)

    return out_p[:n, :fout]


def egconv_reference(adj, feat, weight, bias, lam, k):
    """Pure-JAX f32 reference mirroring the PyTorch forward exactly."""
    degs = jnp.clip(jnp.sum(adj, axis=1), 1.0, None)
    norm = jnp.power(degs, -0.5).reshape(-1, 1)
    h = feat.astype(jnp.float32)
    feat_list = [h]
    for _ in range(k):
        h = h * norm
        h = adj @ h
        h = h * norm
        feat_list.append(h)
    out = jnp.zeros((feat.shape[0], weight.shape[0]), jnp.float32)
    for i, f in enumerate(feat_list):
        c = (lam ** i) / math.factorial(i)
        out = out + (f * c) @ weight.T + bias
    return out


if __name__ == "__main__":
    key = jax.random.PRNGKey(0)
    k_adj, k_feat, k_w, k_b, k_lam = jax.random.split(key, 5)

    # Small synthetic problem: N nodes, in_feats -> out_feats, k propagation steps.
    N, IN_FEATS, OUT_FEATS, K = 16, 32, 32, 3

    # Random directed graph + self-loops (avoids zero in-degree).
    adj = (jax.random.uniform(k_adj, (N, N)) < 0.3).astype(jnp.float32)
    adj = jnp.maximum(adj, jnp.eye(N, dtype=jnp.float32))

    feat = jax.random.normal(k_feat, (N, IN_FEATS), dtype=jnp.float32)

    # Parameter init following EGConv.reset_parameters (bias randomized to
    # actually exercise the (k+1)*bias path).
    stdv = 1.0 / math.sqrt(OUT_FEATS)
    weight = jax.random.uniform(k_w, (OUT_FEATS, IN_FEATS),
                                minval=-stdv, maxval=stdv, dtype=jnp.float32)
    bias = jax.random.uniform(k_b, (OUT_FEATS,),
                              minval=-stdv, maxval=stdv, dtype=jnp.float32)
    stdvk = 1.0 / math.sqrt(K)
    lam = jax.random.uniform(k_lam, (), minval=-stdvk, maxval=stdvk,
                             dtype=jnp.float32)

    out = egconv_forward(adj, feat, weight, bias, lam, K)
    out = jax.block_until_ready(out)

    ref = egconv_reference(adj, feat, weight, bias, lam, K)
    assert out.shape == (N, OUT_FEATS)
    max_err = float(jnp.max(jnp.abs(out - ref)))
    # bf16 propagation + bf16 projection matmuls -> widened tolerance vs the
    # full-f32 reference.
    assert jnp.allclose(out, ref, atol=3e-2, rtol=3e-2), \
        f"mismatch vs reference (max abs err {max_err})"

    print("KERNEL_OK")
</pallas_src>

<mosaic_0001>
module attributes {stable_mosaic.version = 11 : i64} {
  func.func @egconv_kernel(%arg0: i32, %arg1: i32, %arg2: memref<4xf32, #tpu.memory_space<smem>>, %arg3: memref<128x128xi8, #tpu.memory_space<vmem>>, %arg4: memref<128x128xf32, #tpu.memory_space<vmem>>, %arg5: memref<128x128xbf16, #tpu.memory_space<vmem>>, %arg6: memref<1x128xf32, #tpu.memory_space<vmem>>, %arg7: memref<128x128xf32, #tpu.memory_space<vmem>>, %arg8: memref<2x128x128xbf16, #tpu.memory_space<vmem>>, %arg9: memref<128x128xf32, #tpu.memory_space<vmem>>) attributes {dimension_semantics = [#tpu.dimension_semantics<arbitrary>, #tpu.dimension_semantics<arbitrary>], iteration_bounds = array<i64: 4, 1>, scalar_prefetch = 1 : i64, scratch_operands = 2 : i64, tpu.core_type = #tpu.core_type<tc>, window_params = [{transform_indices = @transform_0, window_bounds = array<i64: 128, 128>}, {transform_indices = @transform_1, window_bounds = array<i64: 128, 128>}, {pipeline_mode = #tpu.pipeline_mode<synchronous>, transform_indices = @transform_2, window_bounds = array<i64: 128, 128>}, {pipeline_mode = #tpu.pipeline_mode<synchronous>, transform_indices = @transform_3, window_bounds = array<i64: 1, 128>}, {transform_indices = @transform_4, window_bounds = array<i64: 128, 128>}]} {
    %c128_i32 = arith.constant 128 : i32
    %0 = arith.muli %arg1, %c128_i32 : i32
    %1 = tpu.assume_multiple %0, 128 : i32
    %c1_i32 = arith.constant 1 : i32
    %2 = arith.andi %arg0, %c1_i32 : i32
    %c1_i32_0 = arith.constant 1 : i32
    %3 = arith.subi %c1_i32_0, %2 : i32
    %cst = arith.constant 0.000000e+00 : f32
    %4 = vector.broadcast %cst : f32 to vector<128x1xf32>
    %c0 = arith.constant 0 : index
    %c0_1 = arith.constant 0 : index
    %5 = vector.load %arg3[%c0, %c0_1] : memref<128x128xi8, #tpu.memory_space<vmem>>, vector<128x128xi8>
    %6 = arith.sitofp %5 : vector<128x128xi8> to vector<128x128xf32>
    %cst_2 = arith.constant dense<0.000000e+00> : vector<128xf32>
    %7 = vector.multi_reduction <add>, %6, %cst_2 [1] : vector<128x128xf32> to vector<128xf32>
    %8 = vector.shape_cast %7 : vector<128xf32> to vector<128x1xf32>
    %9 = arith.addf %4, %8 : vector<128x1xf32>
    %cst_3 = arith.constant 1.000000e+00 : f32
    %10 = vector.broadcast %cst_3 : f32 to vector<128x1xf32>
    %11 = arith.maximumf %9, %10 : vector<128x1xf32>
    %12 = math.rsqrt %11 : vector<128x1xf32>
    %c0_i32 = arith.constant 0 : i32
    %13 = arith.cmpi eq, %arg0, %c0_i32 : i32
    %14 = arith.extui %13 : i1 to i32
    %c0_i32_4 = arith.constant 0 : i32
    %15 = arith.cmpi ne, %14, %c0_i32_4 : i32
    scf.if %15 {
      %c0_8 = arith.constant 0 : index
      %c0_9 = arith.constant 0 : index
      %22 = vector.load %arg4[%c0_8, %c0_9] : memref<128x128xf32, #tpu.memory_space<vmem>>, vector<128x128xf32>
      %c0_10 = arith.constant 0 : index
      %23 = memref.load %arg2[%c0_10] : memref<4xf32, #tpu.memory_space<smem>>
      %24 = vector.broadcast %23 : f32 to vector<128x128xf32>
      %25 = arith.mulf %24, %22 : vector<128x128xf32>
      %26 = arith.index_cast %1 : i32 to index
      %c0_11 = arith.constant 0 : index
      %27 = vector.load %arg9[%26, %c0_11] : memref<128x128xf32, #tpu.memory_space<vmem>>, vector<128x128xf32>
      tpu.vector_store %arg9[%26, %c0_11], %25 {strides = array<i32>} : memref<128x128xf32, #tpu.memory_space<vmem>>, vector<128x128xf32>,
      %28 = vector.broadcast %12 : vector<128x1xf32> to vector<128x128xf32>
      %29 = arith.mulf %28, %22 : vector<128x128xf32>
      %30 = arith.truncf %29 : vector<128x128xf32> to vector<128x128xbf16>
      %31 = arith.index_cast %2 : i32 to index
      %32 = arith.index_cast %1 : i32 to index
      %c0_12 = arith.constant 0 : index
      %33 = vector.load %arg8[%31, %32, %c0_12] : memref<2x128x128xbf16, #tpu.memory_space<vmem>>, vector<1x128x128xbf16>
      %34 = vector.shape_cast %33 : vector<1x128x128xbf16> to vector<128x128xbf16>
      %35 = vector.shape_cast %30 : vector<128x128xbf16> to vector<1x128x128xbf16>
      tpu.vector_store %arg8[%31, %32, %c0_12], %35 {strides = array<i32>} : memref<2x128x128xbf16, #tpu.memory_space<vmem>>, vector<1x128x128xbf16>,
    } else {
    }
    %c0_i32_5 = arith.constant 0 : i32
    %16 = arith.cmpi sgt, %arg0, %c0_i32_5 : i32
    %17 = arith.extui %16 : i1 to i32
    %c0_i32_6 = arith.constant 0 : i32
    %18 = arith.cmpi ne, %17, %c0_i32_6 : i32
    scf.if %18 {
      %c0_8 = arith.constant 0 : index
      %c0_9 = arith.constant 0 : index
      %22 = vector.load %arg3[%c0_8, %c0_9] : memref<128x128xi8, #tpu.memory_space<vmem>>, vector<128x128xi8>
      %23 = arith.sitofp %22 : vector<128x128xi8> to vector<128x128xbf16>
      %24 = arith.index_cast %3 : i32 to index
      %c0_10 = arith.constant 0 : index
      %c0_11 = arith.constant 0 : index
      %25 = vector.load %arg8[%24, %c0_10, %c0_11] : memref<2x128x128xbf16, #tpu.memory_space<vmem>>, vector<1x128x128xbf16>
      %26 = vector.shape_cast %25 : vector<1x128x128xbf16> to vector<128x128xbf16>
      %cst_12 = arith.constant dense<0.000000e+00> : vector<128x128xf32>
      %27 = tpu.matmul %23, %26, %cst_12 {dimension_numbers = #tpu.dot_dimension_numbers<[1], [0], [0], [1], [0, 0, 1, 1], [], []>} : vector<128x128xbf16>, vector<128x128xbf16>, vector<128x128xf32> -> vector<128x128xf32>
      %28 = vector.broadcast %12 : vector<128x1xf32> to vector<128x128xf32>
      %29 = arith.mulf %28, %27 : vector<128x128xf32>
      %30 = arith.index_cast %1 : i32 to index
      %c0_13 = arith.constant 0 : index
      %31 = vector.load %arg9[%30, %c0_13] : memref<128x128xf32, #tpu.memory_space<vmem>>, vector<128x128xf32>
      %32 = arith.index_cast %arg0 : i32 to index
      %33 = memref.load %arg2[%32] : memref<4xf32, #tpu.memory_space<smem>>
      %34 = vector.broadcast %33 : f32 to vector<128x128xf32>
      %35 = arith.mulf %34, %29 : vector<128x128xf32>
      %36 = arith.addf %31, %35 : vector<128x128xf32>
      %37 = arith.index_cast %1 : i32 to index
      %c0_14 = arith.constant 0 : index
      %38 = vector.load %arg9[%37, %c0_14] : memref<128x128xf32, #tpu.memory_space<vmem>>, vector<128x128xf32>
      tpu.vector_store %arg9[%37, %c0_14], %36 {strides = array<i32>} : memref<128x128xf32, #tpu.memory_space<vmem>>, vector<128x128xf32>,
      %39 = vector.broadcast %12 : vector<128x1xf32> to vector<128x128xf32>
      %40 = arith.mulf %39, %29 : vector<128x128xf32>
      %41 = arith.truncf %40 : vector<128x128xf32> to vector<128x128xbf16>
      %42 = arith.index_cast %2 : i32 to index
      %43 = arith.index_cast %1 : i32 to index
      %c0_15 = arith.constant 0 : index
      %44 = vector.load %arg8[%42, %43, %c0_15] : memref<2x128x128xbf16, #tpu.memory_space<vmem>>, vector<1x128x128xbf16>
      %45 = vector.shape_cast %44 : vector<1x128x128xbf16> to vector<128x128xbf16>
      %46 = vector.shape_cast %41 : vector<128x128xbf16> to vector<1x128x128xbf16>
      tpu.vector_store %arg8[%42, %43, %c0_15], %46 {strides = array<i32>} : memref<2x128x128xbf16, #tpu.memory_space<vmem>>, vector<1x128x128xbf16>,
    } else {
    }
    %c3_i32 = arith.constant 3 : i32
    %19 = arith.cmpi eq, %arg0, %c3_i32 : i32
    %20 = arith.extui %19 : i1 to i32
    %c0_i32_7 = arith.constant 0 : i32
    %21 = arith.cmpi ne, %20, %c0_i32_7 : i32
    scf.if %21 {
      %22 = arith.index_cast %1 : i32 to index
      %c0_8 = arith.constant 0 : index
      %23 = vector.load %arg9[%22, %c0_8] : memref<128x128xf32, #tpu.memory_space<vmem>>, vector<128x128xf32>
      %24 = arith.truncf %23 : vector<128x128xf32> to vector<128x128xbf16>
      %c0_9 = arith.constant 0 : index
      %c0_10 = arith.constant 0 : index
      %25 = vector.load %arg5[%c0_9, %c0_10] : memref<128x128xbf16, #tpu.memory_space<vmem>>, vector<128x128xbf16>
      %cst_11 = arith.constant dense<0.000000e+00> : vector<128x128xf32>
      %26 = tpu.matmul %24, %25, %cst_11 {dimension_numbers = #tpu.dot_dimension_numbers<[1], [0], [0], [1], [0, 0, 1, 1], [], []>} : vector<128x128xbf16>, vector<128x128xbf16>, vector<128x128xf32> -> vector<128x128xf32>
      %c0_12 = arith.constant 0 : index
      %c0_13 = arith.constant 0 : index
      %27 = vector.load %arg6[%c0_12, %c0_13] : memref<1x128xf32, #tpu.memory_space<vmem>>, vector<1x128xf32>
      %28 = vector.broadcast %27 : vector<1x128xf32> to vector<128x128xf32>
      %29 = arith.addf %26, %28 : vector<128x128xf32>
      %c0_14 = arith.constant 0 : index
      %c0_15 = arith.constant 0 : index
      %30 = vector.load %arg7[%c0_14, %c0_15] : memref<128x128xf32, #tpu.memory_space<vmem>>, vector<128x128xf32>
      tpu.vector_store %arg7[%c0_14, %c0_15], %29 {strides = array<i32>} : memref<128x128xf32, #tpu.memory_space<vmem>>, vector<128x128xf32>,
    } else {
    }
    return
  }
  func.func @transform_0(%arg0: i32, %arg1: i32, %arg2: memref<4xf32, #tpu.memory_space<smem>>) -> (i32, i32) {
    %c0_i32 = arith.constant 0 : i32
    %c0_i32_0 = arith.constant 0 : i32
    return %arg1, %c0_i32 : i32, i32
  }
  func.func @transform_1(%arg0: i32, %arg1: i32, %arg2: memref<4xf32, #tpu.memory_space<smem>>) -> (i32, i32) {
    %c0_i32 = arith.constant 0 : i32
    %0 = arith.cmpi eq, %arg0, %c0_i32 : i32
    %c0_i32_0 = arith.constant 0 : i32
    %1 = arith.select %0, %arg1, %c0_i32_0 : i32
    %c0_i32_1 = arith.constant 0 : i32
    %c0_i32_2 = arith.constant 0 : i32
    return %1, %c0_i32_1 : i32, i32
  }
  func.func @transform_2(%arg0: i32, %arg1: i32, %arg2: memref<4xf32, #tpu.memory_space<smem>>) -> (i32, i32) {
    %c0_i32 = arith.constant 0 : i32
    %c0_i32_0 = arith.constant 0 : i32
    %c0_i32_1 = arith.constant 0 : i32
    return %c0_i32, %c0_i32_0 : i32, i32
  }
  func.func @transform_3(%arg0: i32, %arg1: i32, %arg2: memref<4xf32, #tpu.memory_space<smem>>) -> (i32, i32) {
    %c0_i32 = arith.constant 0 : i32
    %c0_i32_0 = arith.constant 0 : i32
    %c0_i32_1 = arith.constant 0 : i32
    return %c0_i32, %c0_i32_0 : i32, i32
  }
  func.func @transform_4(%arg0: i32, %arg1: i32, %arg2: memref<4xf32, #tpu.memory_space<smem>>) -> (i32, i32) {
    %c3_i32 = arith.constant 3 : i32
    %0 = arith.cmpi eq, %arg0, %c3_i32 : i32
    %c0_i32 = arith.constant 0 : i32
    %1 = arith.select %0, %arg1, %c0_i32 : i32
    %c0_i32_0 = arith.constant 0 : i32
    %c0_i32_1 = arith.constant 0 : i32
    return %1, %c0_i32_0 : i32, i32
  }
}

</mosaic_0001>

<llo_original>
// kernel: tpu_custom_call.1
$region0: #{tpu_custom_call.1}
  #allocation0 [shape = 'u32[]', space=smem, size = 0x4, offset = 0x4, fixed_abs, tag = 'smem constant byte address 0x4 - core index']
  #allocation1 [shape = 'u32[144,128]{1,0:T(1,128)}', space=vmem, size = 0x12000, scoped, tag = 'internal scratch']
  #allocation2 [shape = 'bf16[2,128,128]{2,1,0:T(16,128)(2,1)}', space=vmem, size = 0x10000, scoped, tag = 'scratch operand']
  #allocation3 [shape = 'f32[128,128]{1,0:T(8,128)}', space=vmem, size = 0x10000, scoped, tag = 'scratch operand']
  #allocation4 [shape = 's32[1]{0}', space=sflag, size = 0x4, scoped, tag = 'scoped memory for tpu_custom_call.1']
  #allocation5 [shape = 'u8[512]{0}', space=smem, size = 0x200, scoped, tag = 'prefetched SMEM operand 0']
  %s0 = inlined_call_operand.hbm [shape: f32[4], index: 0, kind: input, shape index: {}]
  %s1 = inlined_call_operand.hbm [shape: s8[128,128], index: 1, kind: input, shape index: {}]
  %s2 = inlined_call_operand.hbm [shape: f32[128,128], index: 2, kind: input, shape index: {}]
  %s3 = inlined_call_operand.hbm [shape: bf16[128,128], index: 3, kind: input, shape index: {}]
  %s4 = inlined_call_operand.vmem [shape: f32[1,128], index: 4, kind: input, shape index: {}]
  %s5 = inlined_call_operand.hbm [shape: f32[128,128], index: 5, kind: output, shape index: {}]
  %s6 = sld [smem:[#allocation0]]
  $region73: #{tpu_custom_call.1} parent=0
    _
  %s8 = ssub.s32 1, %s6
  %s9 = scalar_select 0, %s8, %s6
  %11 = dma.hbm_to_smem %s0, 16, [#allocation5], [#allocation4]
  %12 = dma.done [#allocation4], 16
  %13 = sfence
  $region1: #{tpu_custom_call.1} parent=0
    #allocation6 [shape = 'u8[16384]{0}', space=vmem, size = 0x4000, scoped, tag = 'input window, operand 1, single buffered']
    #allocation7 [shape = 's32[2]{0}', space=sflag, size = 0x8, scoped, tag = 'scoped memory for tpu_custom_call.1']
    #allocation8 [shape = 's32[2]{0}', space=sflag, size = 0x8, scoped, tag = 'scoped memory for tpu_custom_call.1']
    #allocation9 [shape = 'u8[131072]{0}', space=vmem, size = 0x20000, scoped, tag = 'input window, operand 2']
    #allocation10 [shape = 's32[2]{0}', space=sflag, size = 0x8, scoped, tag = 'scoped memory for tpu_custom_call.1']
    #allocation11 [shape = 'u8[32768]{0}', space=vmem, size = 0x8000, scoped, tag = 'input window, operand 3, single buffered']
    #allocation12 [shape = 'u8[131072]{0}', space=vmem, size = 0x20000, scoped, tag = 'output window, operand 0']
    %14 = vsyncpa [#allocation7], 0
    %15 = vsyncpa [#allocation10], 0
    %s16 = scalar_lea.sflag [#allocation10], 1
    %17 = vsyncpa %s16, 0
    %18 = vsyncpa [#allocation8], 0
    %s19 = scalar_lea.sflag [#allocation8], 1
    %20 = vsyncpa %s19, 0
    loop: start=0, step=1, limit=6
    $region2: #{tpu_custom_call.1} parent=1 // loop_pre_header
      _
    $region3: #{tpu_custom_call.1} parent=1 // loop_header
      %s22 = sphi 0, %s26
      %p23 = scmp.ge.s32.totalorder %s22, 6
      %s29 = sphi 0, %s41
      %s30 = sphi 0, %s37
      %s31 = sphi 0, %s29
      %s32 = sphi 0, %s30
      %s33 = sphi 0, %s31
      %s34 = sphi 0, %s32
      %s44 = sphi 0, %s46
      %s47 = sphi 0, %s44
      %s48 = sphi 0, %s47
      %s64 = sphi 0, %s48
      %s74 = sphi 0, %s76
      %s77 = sphi 0, %s74
      %s78 = sphi 0, %s77
      %s94 = sphi 0, %s78
      %s98 = sphi 0, %s98
      %s100 = sphi 0, %s98
      %s101 = sphi 0, %s100
      %s115 = sphi 0, %s101
      %s119 = sphi 0, %s119
      %s121 = sphi 0, %s119
      %s122 = sphi 0, %s121
      %s136 = sphi 0, %s122
      %s146 = sphi 0, %s148
      %s149 = sphi 0, %s146
      %s150 = sphi 0, %s149
      %s166 = sphi 0, %s150
    $region4: #{tpu_custom_call.1} parent=1 // loop_header_branch
      %25 = sbr.rel (%p23) target = $region8
    $region5: #{tpu_custom_call.1} parent=1 // loop_body
      %s27 = ssub.s32 %s22, 1
      %s28 = ssub.s32 %s22, 2
      %s35 = sadd.s32 1, %s30
      %p36 = scmp.ge.s32.totalorder %s35, 1
      %s37 = scalar_select %p36, 0, %s35
      %s38 = sadd.s32 1, %s29
      %s39 = scalar_select %p36, %s38, %s29
      %p40 = scmp.ge.s32.totalorder %s39, 4
      %s41 = scalar_select %p40, 0, %s39
      %s42 = ssub.s32 %s30, %s37
      %p43 = scmp.eq.s32.totalorder %s42, 0
      %s45 = sadd.s32 %s44, 1
      %s46 = scalar_select %p43, %s44, %s45
      %p49 = pneg %p43
      %p50 = scmp.eq.s32.totalorder %s22, 3
      %p51 = por %p49, %p50
      %p52 = scmp.ne.s32.totalorder %s44, %s47
      %p53 = scmp.eq.s32.totalorder %s22, 0
      %p54 = por %p52, %p53
      %p55 = scmp.ne.s32.totalorder %s44, %s47
      %p56 = scmp.eq.s32.totalorder %s27, 3
      %p57 = por %p55, %p56
      %p58 = scmp.ne.s32.totalorder %s47, %s48
      %p59 = scmp.eq.s32.totalorder %s27, 0
      %p60 = por %p58, %p59
      %p61 = scmp.ne.s32.totalorder %s47, %s48
      %p62 = scmp.eq.s32.totalorder %s28, 3
      %p63 = por %p61, %p62
      %p65 = scmp.ne.s32.totalorder %s48, %s64
      %p66 = scmp.eq.s32.totalorder %s28, 0
      %p67 = por %p65, %p66
      %p68 = scmp.eq.s32.totalorder %s29, 0
      %s69 = scalar_select %p68, %s30, 0
      %p70 = scmp.eq.s32.totalorder %s41, 0
      %s71 = scalar_select %p70, %s37, 0
      %s72 = ssub.s32 %s69, %s71
      %p73 = scmp.eq.s32.totalorder %s72, 0
      %s75 = sadd.s32 %s74, 1
      %s76 = scalar_select %p73, %s74, %s75
      %p79 = pneg %p73
      %p80 = scmp.eq.s32.totalorder %s22, 3
      %p81 = por %p79, %p80
      %p82 = scmp.ne.s32.totalorder %s74, %s77
      %p83 = scmp.eq.s32.totalorder %s22, 0
      %p84 = por %p82, %p83
      %p85 = scmp.ne.s32.totalorder %s74, %s77
      %p86 = scmp.eq.s32.totalorder %s27, 3
      %p87 = por %p85, %p86
      %p88 = scmp.ne.s32.totalorder %s77, %s78
      %p89 = scmp.eq.s32.totalorder %s27, 0
      %p90 = por %p88, %p89
      %p91 = scmp.ne.s32.totalorder %s77, %s78
      %p92 = scmp.eq.s32.totalorder %s28, 3
      %p93 = por %p91, %p92
      %p95 = scmp.ne.s32.totalorder %s78, %s94
      %p96 = scmp.eq.s32.totalorder %s28, 0
      %p97 = por %p95, %p96
      %s99 = sadd.s32 %s98, 1
      %p102 = scmp.eq.s32.totalorder %s22, 3
      %p103 = scmp.ne.s32.totalorder %s98, %s100
      %p104 = scmp.eq.s32.totalorder %s22, 0
      %p105 = por %p103, %p104
      %p106 = scmp.ne.s32.totalorder %s98, %s100
      %p107 = scmp.eq.s32.totalorder %s27, 3
      %p108 = por %p106, %p107
      %p109 = scmp.ne.s32.totalorder %s100, %s101
      %p110 = scmp.eq.s32.totalorder %s27, 0
      %p111 = por %p109, %p110
      %p112 = scmp.ne.s32.totalorder %s100, %s101
      %p113 = scmp.eq.s32.totalorder %s28, 3
      %p114 = por %p112, %p113
      %p116 = scmp.ne.s32.totalorder %s101, %s115
      %p117 = scmp.eq.s32.totalorder %s28, 0
      %p118 = por %p116, %p117
      %s120 = sadd.s32 %s119, 1
      %p123 = scmp.eq.s32.totalorder %s22, 3
      %p124 = scmp.ne.s32.totalorder %s119, %s121
      %p125 = scmp.eq.s32.totalorder %s22, 0
      %p126 = por %p124, %p125
      %p127 = scmp.ne.s32.totalorder %s119, %s121
      %p128 = scmp.eq.s32.totalorder %s27, 3
      %p129 = por %p127, %p128
      %p130 = scmp.ne.s32.totalorder %s121, %s122
      %p131 = scmp.eq.s32.totalorder %s27, 0
      %p132 = por %p130, %p131
      %p133 = scmp.ne.s32.totalorder %s121, %s122
      %p134 = scmp.eq.s32.totalorder %s28, 3
      %p135 = por %p133, %p134
      %p137 = scmp.ne.s32.totalorder %s122, %s136
      %p138 = scmp.eq.s32.totalorder %s28, 0
      %p139 = por %p137, %p138
      %p140 = scmp.eq.s32.totalorder %s29, 3
      %s141 = scalar_select %p140, %s30, 0
      %p142 = scmp.eq.s32.totalorder %s41, 3
      %s143 = scalar_select %p142, %s37, 0
      %s144 = ssub.s32 %s141, %s143
      %p145 = scmp.eq.s32.totalorder %s144, 0
      %s147 = sadd.s32 %s146, 1
      %s148 = scalar_select %p145, %s146, %s147
      %p151 = pneg %p145
      %p152 = scmp.eq.s32.totalorder %s22, 3
      %p153 = por %p151, %p152
      %p154 = scmp.ne.s32.totalorder %s146, %s149
      %p155 = scmp.eq.s32.totalorder %s22, 0
      %p156 = por %p154, %p155
      %p157 = scmp.ne.s32.totalorder %s146, %s149
      %p158 = scmp.eq.s32.totalorder %s27, 3
      %p159 = por %p157, %p158
      %p160 = scmp.ne.s32.totalorder %s149, %s150
      %p161 = scmp.eq.s32.totalorder %s27, 0
      %p162 = por %p160, %p161
      %p163 = scmp.ne.s32.totalorder %s149, %s150
      %p164 = scmp.eq.s32.totalorder %s28, 3
      %p165 = por %p163, %p164
      %p167 = scmp.ne.s32.totalorder %s150, %s166
      %p168 = scmp.eq.s32.totalorder %s28, 0
      %p169 = por %p167, %p168
      %p170 = scmp.le.s32.totalorder 1, %s22
      %p171 = scmp.lt.s32.totalorder %s22, 5
      %p172 = pnand %p170, %p171
      %p173 = pneg %p172
      // Predicated region
      $region9: #{tpu_custom_call.1} parent=5 // pred_check
        _
      $region10: #{tpu_custom_call.1} parent=5 // pred_check_branch
        %175 = sbr.rel (%p172) target = $region12
      $region11: #{tpu_custom_call.1} parent=5 // pred_region
        %s176 = ssub.s32 %s22, 1
        // Predicated region
        $region13: #{tpu_custom_call.1} parent=11 // pred_check
          %p177 = pneg %p60
        $region14: #{tpu_custom_call.1} parent=11 // pred_check_branch
          %179 = sbr.rel (%p177) target = $region16
        $region15: #{tpu_custom_call.1} parent=11 // pred_region
          %s180 = smul.u32 4, %s32
          %s182 = ssub.s32 512, 512
          %183 = vsyncadd [#allocation7], %s182
          %s184 = smul.addr %s180, 128
          %s185 = scalar_lea.hbm %s1, %s184
          %s186 = sshll.u32 [#allocation6], 4
          %s187 = int_to_ptr.vmem [resolvable:$true] %s186
          %192 = dma.hbm_to_vmem [thread:$0]  %s185, 512, %s187, [#allocation7], 128, 128, 8
        $region16: #{tpu_custom_call.1} parent=11 // pred_fallthru
          _
        // Predicated region
        $region17: #{tpu_custom_call.1} parent=11 // pred_check
          %p193 = pneg %p111
        $region18: #{tpu_custom_call.1} parent=11 // pred_check_branch
          %195 = sbr.rel (%p193) target = $region20
        $region19: #{tpu_custom_call.1} parent=11 // pred_region
          %s197 = ssub.s32 1024, 1024
          %198 = vsyncadd [#allocation10], %s197
          %s199 = sshll.u32 [#allocation11], 4
          %s200 = int_to_ptr.vmem [resolvable:$true] %s199
          %205 = dma.hbm_to_vmem [thread:$0]  %s3, 1024, %s200, [#allocation10], 64, 64, 4
        $region20: #{tpu_custom_call.1} parent=11 // pred_fallthru
          _
        // Predicated region
        $region21: #{tpu_custom_call.1} parent=11 // pred_check
          %p206 = pneg %p132
        $region22: #{tpu_custom_call.1} parent=11 // pred_check_branch
          %208 = sbr.rel (%p206) target = $region24
        $region23: #{tpu_custom_call.1} parent=11 // pred_region
          _
        $region24: #{tpu_custom_call.1} parent=11 // pred_fallthru
          _
      $region12: #{tpu_custom_call.1} parent=5 // pred_fallthru
        _
      %p209 = scmp.lt.s32.totalorder %s22, 4
      // Predicated region
      $region25: #{tpu_custom_call.1} parent=5 // pred_check
        %p210 = pneg %p209
      $region26: #{tpu_custom_call.1} parent=5 // pred_check_branch
        %212 = sbr.rel (%p210) target = $region28
      $region27: #{tpu_custom_call.1} parent=5 // pred_region
        // Predicated region
        $region29: #{tpu_custom_call.1} parent=27 // pred_check
          %p213 = pneg %p84
        $region30: #{tpu_custom_call.1} parent=27 // pred_check_branch
          %215 = sbr.rel (%p213) target = $region32
        $region31: #{tpu_custom_call.1} parent=27 // pred_region
          %s216 = sand.u32 %s22, 1
          %s217 = scalar_lea.sflag [#allocation10], %s216
          %s218 = sand.u32 %s74, 1
          %s219 = smul.addr %s218, 128
          %s220 = scalar_lea.vmem [#allocation9], %s219
          %p221 = scmp.eq.s32.totalorder %s29, 0
          %s222 = scalar_select %p221, %s30, 0
          %s223 = smul.u32 16, %s222
          %s225 = ssub.s32 2048, 2048
          %226 = vsyncadd %s217, %s225
          %s227 = smul.addr %s223, 128
          %s228 = scalar_lea.hbm %s2, %s227
          %s229 = sshll.u32 %s220, 4
          %s230 = int_to_ptr.vmem [resolvable:$true] %s229
          %235 = dma.hbm_to_vmem [thread:$0]  %s228, 2048, %s230, %s217, 128, 128, 8
        $region32: #{tpu_custom_call.1} parent=27 // pred_fallthru
          _
      $region28: #{tpu_custom_call.1} parent=5 // pred_fallthru
        _
      %p236 = scmp.le.s32.totalorder 1, %s22
      %p237 = scmp.lt.s32.totalorder %s22, 5
      %p238 = pnand %p236, %p237
      %p239 = pneg %p238
      // Predicated region
      $region33: #{tpu_custom_call.1} parent=5 // pred_check
        _
      $region34: #{tpu_custom_call.1} parent=5 // pred_check_branch
        %241 = sbr.rel (%p238) target = $region36
      $region35: #{tpu_custom_call.1} parent=5 // pred_region
        %s242 = ssub.s32 %s22, 1
        // Predicated region
        $region37: #{tpu_custom_call.1} parent=35 // pred_check
          %p243 = pneg %p60
        $region38: #{tpu_custom_call.1} parent=35 // pred_check_branch
          %245 = sbr.rel (%p243) target = $region40
        $region39: #{tpu_custom_call.1} parent=35 // pred_region
          %246 = dma.done [#allocation7], 512
        $region40: #{tpu_custom_call.1} parent=35 // pred_fallthru
          _
        %s247 = sand.u32 %s27, 1
        %s248 = scalar_lea.sflag [#allocation10], %s247
        %s249 = sand.u32 %s77, 1
        %s250 = smul.addr %s249, 128
        %s251 = scalar_lea.vmem [#allocation9], %s250
        // Predicated region
        $region41: #{tpu_custom_call.1} parent=35 // pred_check
          %p252 = pneg %p90
        $region42: #{tpu_custom_call.1} parent=35 // pred_check_branch
          %254 = sbr.rel (%p252) target = $region44
        $region43: #{tpu_custom_call.1} parent=35 // pred_region
          %255 = dma.done %s248, 2048
        $region44: #{tpu_custom_call.1} parent=35 // pred_fallthru
          _
        // Predicated region
        $region45: #{tpu_custom_call.1} parent=35 // pred_check
          %p256 = pneg %p111
        $region46: #{tpu_custom_call.1} parent=35 // pred_check_branch
          %258 = sbr.rel (%p256) target = $region48
        $region47: #{tpu_custom_call.1} parent=35 // pred_region
          %259 = dma.done [#allocation10], 1024
        $region48: #{tpu_custom_call.1} parent=35 // pred_fallthru
          _
        %p260 = pneg %p60
        %p261 = pneg %p57
        %s262 = sand.u32 %s27, 1
        %s263 = scalar_lea.sflag [#allocation10], %s262
        %s264 = sand.u32 %s77, 1
        %s265 = smul.addr %s264, 128
        %s266 = scalar_lea.vmem [#allocation9], %s265
        %p267 = pneg %p90
        %p268 = pneg %p87
        %p269 = pneg %p111
        %p270 = pneg %p108
        %p271 = pneg %p132
        %p272 = pneg %p129
        %p273 = pneg %p162
        %p274 = pneg %p159
        %s275 = sand.u32 %s149, 1
        %s276 = scalar_lea.sflag [#allocation8], %s275
        %s277 = sand.u32 %s149, 1
        %s278 = smul.addr %s277, 128
        %s279 = scalar_lea.vmem [#allocation12], %s278
        %s280 = smul.u32 4, %s32
        %p281 = scmp.eq.s32.totalorder %s31, 0
        %s282 = scalar_select %p281, %s32, 0
        %s283 = smul.u32 16, %s282
        %p284 = scmp.eq.s32.totalorder %s31, 3
        %s285 = scalar_select %p284, %s32, 0
        %s286 = smul.u32 16, %s285
        %s288 = smul.u32 %s32, 128
        %s289 = sand.u32 %s31, 1
        %s290 = ssub.s32 1, %s289
        %v291 = vld [vmem:[#allocation6] sm:$0xff]
        %v292 = vld [vmem:[#allocation6 + $0x8] sm:$0xff]
        %v293 = vld [vmem:[#allocation6 + $0x10] sm:$0xff]
        %v294 = vld [vmem:[#allocation6 + $0x18] sm:$0xff]
        %v295 = vunpack.c.0.s8 %v291
        %v296 = vunpack.c.1.s8 %v291
        %v297 = vunpack.c.2.s8 %v291
        %v298 = vunpack.c.3.s8 %v291
        %v299 = vunpack.c.0.s8 %v292
        %v300 = vunpack.c.1.s8 %v292
        %v301 = vunpack.c.2.s8 %v292
        %v302 = vunpack.c.3.s8 %v292
        %v303 = vunpack.c.0.s8 %v293
        %v304 = vunpack.c.1.s8 %v293
        %v305 = vunpack.c.2.s8 %v293
        %v306 = vunpack.c.3.s8 %v293
        %v307 = vunpack.c.0.s8 %v294
        %v308 = vunpack.c.1.s8 %v294
        %v309 = vunpack.c.2.s8 %v294
        %v310 = vunpack.c.3.s8 %v294
        %v311 = vcvt.s32.f32 %v295
        %v312 = vcvt.s32.f32 %v296
        %v313 = vcvt.s32.f32 %v297
        %v314 = vcvt.s32.f32 %v298
        %v315 = vcvt.s32.f32 %v299
        %v316 = vcvt.s32.f32 %v300
        %v317 = vcvt.s32.f32 %v301
        %v318 = vcvt.s32.f32 %v302
        %v319 = vcvt.s32.f32 %v303
        %v320 = vcvt.s32.f32 %v304
        %v321 = vcvt.s32.f32 %v305
        %v322 = vcvt.s32.f32 %v306
        %v323 = vcvt.s32.f32 %v307
        %v324 = vcvt.s32.f32 %v308
        %v325 = vcvt.s32.f32 %v309
        %v326 = vcvt.s32.f32 %v310
        %327 = vadd.xlane.f32.xlu0 %v311
        %v328 = vpop.xlane.xlu0 %327
        %329 = vadd.xlane.f32.xlu0 %v312
        %v330 = vpop.xlane.xlu0 %329
        %331 = vadd.xlane.f32.xlu0 %v313
        %v332 = vpop.xlane.xlu0 %331
        %333 = vadd.xlane.f32.xlu0 %v314
        %v334 = vpop.xlane.xlu0 %333
        %335 = vadd.xlane.f32.xlu0 %v315
        %v336 = vpop.xlane.xlu0 %335
        %337 = vadd.xlane.f32.xlu0 %v316
        %v338 = vpop.xlane.xlu0 %337
        %339 = vadd.xlane.f32.xlu0 %v317
        %v340 = vpop.xlane.xlu0 %339
        %341 = vadd.xlane.f32.xlu0 %v318
        %v342 = vpop.xlane.xlu0 %341
        %343 = vadd.xlane.f32.xlu0 %v319
        %v344 = vpop.xlane.xlu0 %343
        %345 = vadd.xlane.f32.xlu0 %v320
        %v346 = vpop.xlane.xlu0 %345
        %347 = vadd.xlane.f32.xlu0 %v321
        %v348 = vpop.xlane.xlu0 %347
        %349 = vadd.xlane.f32.xlu0 %v322
        %v350 = vpop.xlane.xlu0 %349
        %351 = vadd.xlane.f32.xlu0 %v323
        %v352 = vpop.xlane.xlu0 %351
        %353 = vadd.xlane.f32.xlu0 %v324
        %v354 = vpop.xlane.xlu0 %353
        %355 = vadd.xlane.f32.xlu0 %v325
        %v356 = vpop.xlane.xlu0 %355
        %357 = vadd.xlane.f32.xlu0 %v326
        %v358 = vpop.xlane.xlu0 %357
        %v359 = vadd.f32 %v328, 0.0
        %v360 = vadd.f32 %v330, 0.0
        %v361 = vadd.f32 %v332, 0.0
        %v362 = vadd.f32 %v334, 0.0
        %v363 = vadd.f32 %v336, 0.0
        %v364 = vadd.f32 %v338, 0.0
        %v365 = vadd.f32 %v340, 0.0
        %v366 = vadd.f32 %v342, 0.0
        %v367 = vadd.f32 %v344, 0.0
        %v368 = vadd.f32 %v346, 0.0
        %v369 = vadd.f32 %v348, 0.0
        %v370 = vadd.f32 %v350, 0.0
        %v371 = vadd.f32 %v352, 0.0
        %v372 = vadd.f32 %v354, 0.0
        %v373 = vadd.f32 %v356, 0.0
        %v374 = vadd.f32 %v358, 0.0
        %v375 = vmax.f32 %v359, 1.0
        %v376 = vmax.f32 %v360, 1.0
        %v377 = vmax.f32 %v361, 1.0
        %v378 = vmax.f32 %v362, 1.0
        %v379 = vmax.f32 %v363, 1.0
        %v380 = vmax.f32 %v364, 1.0
        %v381 = vmax.f32 %v365, 1.0
        %v382 = vmax.f32 %v366, 1.0
        %v383 = vmax.f32 %v367, 1.0
        %v384 = vmax.f32 %v368, 1.0
        %v385 = vmax.f32 %v369, 1.0
        %v386 = vmax.f32 %v370, 1.0
        %v387 = vmax.f32 %v371, 1.0
        %v388 = vmax.f32 %v372, 1.0
        %v389 = vmax.f32 %v373, 1.0
        %v390 = vmax.f32 %v374, 1.0
        %v391 = vrsqrt.pop %v375
        %v392 = vrsqrt.pop %v376
        %v393 = vrsqrt.pop %v377
        %v394 = vrsqrt.pop %v378
        %v395 = vrsqrt.pop %v379
        %v396 = vrsqrt.pop %v380
        %v397 = vrsqrt.pop %v381
        %v398 = vrsqrt.pop %v382
        %v399 = vrsqrt.pop %v383
        %v400 = vrsqrt.pop %v384
        %v401 = vrsqrt.pop %v385
        %v402 = vrsqrt.pop %v386
        %v403 = vrsqrt.pop %v387
        %v404 = vrsqrt.pop %v388
        %v405 = vrsqrt.pop %v389
        %v406 = vrsqrt.pop %v390
        %p407 = scmp.eq.s32.totalorder %s31, 0
        // Predicated region
        $region49: #{tpu_custom_call.1} parent=35 // pred_check
          %p408 = pneg %p407
        $region50: #{tpu_custom_call.1} parent=35 // pred_check_branch
          %410 = sbr.rel (%p408) target = $region52
        $region51: #{tpu_custom_call.1} parent=35 // pred_region
          %v411 = vld [vmem:[%s251] sm:$0xff]
          %v412 = vld [vmem:[%s251 + $0x8] sm:$0xff]
          %v413 = vld [vmem:[%s251 + $0x10] sm:$0xff]
          %v414 = vld [vmem:[%s251 + $0x18] sm:$0xff]
          %v415 = vld [vmem:[%s251 + $0x20] sm:$0xff]
          %v416 = vld [vmem:[%s251 + $0x28] sm:$0xff]
          %v417 = vld [vmem:[%s251 + $0x30] sm:$0xff]
          %v418 = vld [vmem:[%s251 + $0x38] sm:$0xff]
          %v419 = vld [vmem:[%s251 + $0x40] sm:$0xff]
          %v420 = vld [vmem:[%s251 + $0x48] sm:$0xff]
          %v421 = vld [vmem:[%s251 + $0x50] sm:$0xff]
          %v422 = vld [vmem:[%s251 + $0x58] sm:$0xff]
          %v423 = vld [vmem:[%s251 + $0x60] sm:$0xff]
          %v424 = vld [vmem:[%s251 + $0x68] sm:$0xff]
          %v425 = vld [vmem:[%s251 + $0x70] sm:$0xff]
          %v426 = vld [vmem:[%s251 + $0x78] sm:$0xff]
          %s427 = sld [smem:[#allocation5]]
          %v428 = vstv %s427
          %v429 = vmul.f32 %v428, %v411
          %v430 = vmul.f32 %v428, %v412
          %v431 = vmul.f32 %v428, %v413
          %v432 = vmul.f32 %v428, %v414
          %v433 = vmul.f32 %v428, %v415
          %v434 = vmul.f32 %v428, %v416
          %v435 = vmul.f32 %v428, %v417
          %v436 = vmul.f32 %v428, %v418
          %v437 = vmul.f32 %v428, %v419
          %v438 = vmul.f32 %v428, %v420
          %v439 = vmul.f32 %v428, %v421
          %v440 = vmul.f32 %v428, %v422
          %v441 = vmul.f32 %v428, %v423
          %v442 = vmul.f32 %v428, %v424
          %v443 = vmul.f32 %v428, %v425
          %v444 = vmul.f32 %v428, %v426
          %s445 = scalar_lea.vmem [#allocation3], %s288
          %446 = vst [vmem:[%s445] sm:$0xff] %v429
          %447 = vst [vmem:[%s445 + $0x8] sm:$0xff] %v430
          %448 = vst [vmem:[%s445 + $0x10] sm:$0xff] %v431
          %449 = vst [vmem:[%s445 + $0x18] sm:$0xff] %v432
          %450 = vst [vmem:[%s445 + $0x20] sm:$0xff] %v433
          %451 = vst [vmem:[%s445 + $0x28] sm:$0xff] %v434
          %452 = vst [vmem:[%s445 + $0x30] sm:$0xff] %v435
          %453 = vst [vmem:[%s445 + $0x38] sm:$0xff] %v436
          %454 = vst [vmem:[%s445 + $0x40] sm:$0xff] %v437
          %455 = vst [vmem:[%s445 + $0x48] sm:$0xff] %v438
          %456 = vst [vmem:[%s445 + $0x50] sm:$0xff] %v439
          %457 = vst [vmem:[%s445 + $0x58] sm:$0xff] %v440
          %458 = vst [vmem:[%s445 + $0x60] sm:$0xff] %v441
          %459 = vst [vmem:[%s445 + $0x68] sm:$0xff] %v442
          %460 = vst [vmem:[%s445 + $0x70] sm:$0xff] %v443
          %461 = vst [vmem:[%s445 + $0x78] sm:$0xff] %v444
          %v462 = vmul.f32 %v391, %v411
          %v463 = vmul.f32 %v392, %v412
          %v464 = vmul.f32 %v393, %v413
          %v465 = vmul.f32 %v394, %v414
          %v466 = vmul.f32 %v395, %v415
          %v467 = vmul.f32 %v396, %v416
          %v468 = vmul.f32 %v397, %v417
          %v469 = vmul.f32 %v398, %v418
          %v470 = vmul.f32 %v399, %v419
          %v471 = vmul.f32 %v400, %v420
          %v472 = vmul.f32 %v401, %v421
          %v473 = vmul.f32 %v402, %v422
          %v474 = vmul.f32 %v403, %v423
          %v475 = vmul.f32 %v404, %v424
          %v476 = vmul.f32 %v405, %v425
          %v477 = vmul.f32 %v406, %v426
          %v478 = vpack.c.bf16 %v463, %v462
          %v479 = vpack.c.bf16 %v465, %v464
          %v480 = vpack.c.bf16 %v467, %v466
          %v481 = vpack.c.bf16 %v469, %v468
          %v482 = vpack.c.bf16 %v471, %v470
          %v483 = vpack.c.bf16 %v473, %v472
          %v484 = vpack.c.bf16 %v475, %v474
          %v485 = vpack.c.bf16 %v477, %v476
          %s486 = sshra.s32 %s288, 4
          %s487 = sand.u32 %s288, 15
          %s488 = smul.u32 %s289, 8
          %s489 = sadd.s32 %s486, %s488
          %s490 = smul.addr %s489, 8
          %s491 = scalar_lea.vmem [#allocation2], %s490
          %492 = vst [vmem:[%s491] sm:$0xff] %v478
          %493 = vst [vmem:[%s491 + $0x8] sm:$0xff] %v479
          %494 = vst [vmem:[%s491 + $0x10] sm:$0xff] %v480
          %495 = vst [vmem:[%s491 + $0x18] sm:$0xff] %v481
          %496 = vst [vmem:[%s491 + $0x20] sm:$0xff] %v482
          %497 = vst [vmem:[%s491 + $0x28] sm:$0xff] %v483
          %498 = vst [vmem:[%s491 + $0x30] sm:$0xff] %v484
          %499 = vst [vmem:[%s491 + $0x38] sm:$0xff] %v485
        $region52: #{tpu_custom_call.1} parent=35 // pred_fallthru
          _
        %p500 = scmp.gt.s32.totalorder %s31, 0
        // Predicated region
        $region53: #{tpu_custom_call.1} parent=35 // pred_check
          %p501 = pneg %p500
        $region54: #{tpu_custom_call.1} parent=35 // pred_check_branch
          %503 = sbr.rel (%p501) target = $region56
        $region55: #{tpu_custom_call.1} parent=35 // pred_region
          %v504 = vld [vmem:[#allocation6] sm:$0xff]
          %v505 = vld [vmem:[#allocation6 + $0x8] sm:$0xff]
          %v506 = vld [vmem:[#allocation6 + $0x10] sm:$0xff]
          %v507 = vld [vmem:[#allocation6 + $0x18] sm:$0xff]
          %v508 = vunpack.c.l.s8.bf16 %v504
          %v509 = vunpack.c.h.s8.bf16 %v504
          %v510 = vunpack.c.l.s8.bf16 %v505
          %v511 = vunpack.c.h.s8.bf16 %v505
          %v512 = vunpack.c.l.s8.bf16 %v506
          %v513 = vunpack.c.h.s8.bf16 %v506
          %v514 = vunpack.c.l.s8.bf16 %v507
          %v515 = vunpack.c.h.s8.bf16 %v507
          %s516 = smul.u32 %s290, 8
          %s517 = smul.addr %s516, 8
          %s518 = scalar_lea.vmem [#allocation2], %s517
          %v519 = vld [vmem:[%s518] sm:$0xff]
          %v520 = vld [vmem:[%s518 + $0x8] sm:$0xff]
          %v521 = vld [vmem:[%s518 + $0x10] sm:$0xff]
          %v522 = vld [vmem:[%s518 + $0x18] sm:$0xff]
          %v523 = vld [vmem:[%s518 + $0x20] sm:$0xff]
          %v524 = vld [vmem:[%s518 + $0x28] sm:$0xff]
          %v525 = vld [vmem:[%s518 + $0x30] sm:$0xff]
          %v526 = vld [vmem:[%s518 + $0x38] sm:$0xff]
          %527 = vmatprep.subr.bf16.mxu0 0
          %528 = vmatpush1.bf16.msra.mxu0 %v519
          %529 = vmatprep.subr.bf16.mxu0 0
          %530 = vmatpush1.bf16.msra.mxu0 %v520
          %531 = vmatprep.subr.bf16.mxu0 0
          %532 = vmatpush1.bf16.msra.mxu0 %v521
          %533 = vmatprep.subr.bf16.mxu0 0
          %534 = vmatpush1.bf16.msra.mxu0 %v522
          %535 = vmatprep.subr.bf16.mxu0 0
          %536 = vmatpush1.bf16.msra.mxu0 %v523
          %537 = vmatprep.subr.bf16.mxu0 0
          %538 = vmatpush1.bf16.msra.mxu0 %v524
          %539 = vmatprep.subr.bf16.mxu0 0
          %540 = vmatpush1.bf16.msra.mxu0 %v525
          %541 = vmatprep.subr.bf16.mxu0 0
          %542 = vmatpush1.bf16.msra.mxu0 %v526
          %543 = vmatprep.subr.bf16.mxu0 0
          %544 = vmatpush1.bf16.msra.mxu0 0
          %545 = vmatprep.subr.bf16.mxu0 0
          %546 = vmatpush1.bf16.msra.mxu0 0
          %547 = vmatprep.subr.bf16.mxu0 0
          %548 = vmatpush1.bf16.msra.mxu0 0
          %549 = vmatprep.subr.bf16.mxu0 0
          %550 = vmatpush1.bf16.msra.mxu0 0
          %551 = vmatprep.subr.bf16.mxu0 0
          %552 = vmatpush1.bf16.msra.mxu0 0
          %553 = vmatprep.subr.bf16.mxu0 0
          %554 = vmatpush1.bf16.msra.mxu0 0
          %555 = vmatprep.subr.bf16.mxu0 0
          %556 = vmatpush1.bf16.msra.mxu0 0
          %557 = vmatprep.subr.bf16.mxu0 0
          %558 = vmatpush1.bf16.msra.mxu0 0
          %559 = vmatprep.mubr.bf16.mxu0 0
          %560 = vmatmul.mubr.bf16.gmra.mrb[0].mxu0 %v508
          %v561 = vpop.f32.mrb[0].mxu0
          %v562 = vadd.f32 0.0, %v561
          %v563 = vpop.f32.mrb[0].mxu0
          %v564 = vpop.f32.mrb[0].mxu0
          %v565 = vadd.f32 0.0, %v564
          %v566 = vpop.f32.mrb[0].mxu0
          %567 = vmatprep.mubr.bf16.mxu0 0
          %568 = vmatmul.mubr.bf16.gmra.mrb[0].mxu0 %v509
          %v569 = vpop.f32.mrb[0].mxu0
          %v570 = vadd.f32 0.0, %v569
          %v571 = vpop.f32.mrb[0].mxu0
          %v572 = vpop.f32.mrb[0].mxu0
          %v573 = vadd.f32 0.0, %v572
          %v574 = vpop.f32.mrb[0].mxu0
          %575 = vmatprep.mubr.bf16.mxu0 0
          %576 = vmatmul.mubr.bf16.gmra.mrb[0].mxu0 %v510
          %v577 = vpop.f32.mrb[0].mxu0
          %v578 = vadd.f32 0.0, %v577
          %v579 = vpop.f32.mrb[0].mxu0
          %v580 = vpop.f32.mrb[0].mxu0
          %v581 = vadd.f32 0.0, %v580
          %v582 = vpop.f32.mrb[0].mxu0
          %583 = vmatprep.mubr.bf16.mxu0 0
          %584 = vmatmul.mubr.bf16.gmra.mrb[0].mxu0 %v511
          %v585 = vpop.f32.mrb[0].mxu0
          %v586 = vadd.f32 0.0, %v585
          %v587 = vpop.f32.mrb[0].mxu0
          %v588 = vpop.f32.mrb[0].mxu0
          %v589 = vadd.f32 0.0, %v588
          %v590 = vpop.f32.mrb[0].mxu0
          %591 = vmatprep.mubr.bf16.mxu0 0
          %592 = vmatmul.mubr.bf16.gmra.mrb[0].mxu0 %v512
          %v593 = vpop.f32.mrb[0].mxu0
          %v594 = vadd.f32 0.0, %v593
          %v595 = vpop.f32.mrb[0].mxu0
          %v596 = vpop.f32.mrb[0].mxu0
          %v597 = vadd.f32 0.0, %v596
          %v598 = vpop.f32.mrb[0].mxu0
          %599 = vmatprep.mubr.bf16.mxu0 0
          %600 = vmatmul.mubr.bf16.gmra.mrb[0].mxu0 %v513
          %v601 = vpop.f32.mrb[0].mxu0
          %v602 = vadd.f32 0.0, %v601
          %v603 = vpop.f32.mrb[0].mxu0
          %v604 = vpop.f32.mrb[0].mxu0
          %v605 = vadd.f32 0.0, %v604
          %v606 = vpop.f32.mrb[0].mxu0
          %607 = vmatprep.mubr.bf16.mxu0 0
          %608 = vmatmul.mubr.bf16.gmra.mrb[0].mxu0 %v514
          %v609 = vpop.f32.mrb[0].mxu0
          %v610 = vadd.f32 0.0, %v609
          %v611 = vpop.f32.mrb[0].mxu0
          %v612 = vpop.f32.mrb[0].mxu0
          %v613 = vadd.f32 0.0, %v612
          %v614 = vpop.f32.mrb[0].mxu0
          %615 = vmatprep.mubr.bf16.mxu0 0
          %616 = vmatmul.mubr.bf16.gmra.mrb[0].mxu0 %v515
          %v617 = vpop.f32.mrb[0].mxu0
          %v618 = vadd.f32 0.0, %v617
          %v619 = vpop.f32.mrb[0].mxu0
          %v620 = vpop.f32.mrb[0].mxu0
          %v621 = vadd.f32 0.0, %v620
          %v622 = vpop.f32.mrb[0].mxu0
          %623 = vdwg.mxu0
          %v624 = vmul.f32 %v391, %v562
          %v625 = vmul.f32 %v392, %v565
          %v626 = vmul.f32 %v393, %v570
          %v627 = vmul.f32 %v394, %v573
          %v628 = vmul.f32 %v395, %v578
          %v629 = vmul.f32 %v396, %v581
          %v630 = vmul.f32 %v397, %v586
          %v631 = vmul.f32 %v398, %v589
          %v632 = vmul.f32 %v399, %v594
          %v633 = vmul.f32 %v400, %v597
          %v634 = vmul.f32 %v401, %v602
          %v635 = vmul.f32 %v402, %v605
          %v636 = vmul.f32 %v403, %v610
          %v637 = vmul.f32 %v404, %v613
          %v638 = vmul.f32 %v405, %v618
          %v639 = vmul.f32 %v406, %v621
          %s640 = scalar_lea.vmem [#allocation3], %s288
          %v641 = vld [vmem:[%s640] sm:$0xff]
          %v642 = vld [vmem:[%s640 + $0x8] sm:$0xff]
          %v643 = vld [vmem:[%s640 + $0x10] sm:$0xff]
          %v644 = vld [vmem:[%s640 + $0x18] sm:$0xff]
          %v645 = vld [vmem:[%s640 + $0x20] sm:$0xff]
          %v646 = vld [vmem:[%s640 + $0x28] sm:$0xff]
          %v647 = vld [vmem:[%s640 + $0x30] sm:$0xff]
          %v648 = vld [vmem:[%s640 + $0x38] sm:$0xff]
          %v649 = vld [vmem:[%s640 + $0x40] sm:$0xff]
          %v650 = vld [vmem:[%s640 + $0x48] sm:$0xff]
          %v651 = vld [vmem:[%s640 + $0x50] sm:$0xff]
          %v652 = vld [vmem:[%s640 + $0x58] sm:$0xff]
          %v653 = vld [vmem:[%s640 + $0x60] sm:$0xff]
          %v654 = vld [vmem:[%s640 + $0x68] sm:$0xff]
          %v655 = vld [vmem:[%s640 + $0x70] sm:$0xff]
          %v656 = vld [vmem:[%s640 + $0x78] sm:$0xff]
          %s657 = sld [smem:[#allocation5 + %s31]]
          %v658 = vstv %s657
          %v659 = vmul.f32 %v658, %v624
          %v660 = vmul.f32 %v658, %v625
          %v661 = vmul.f32 %v658, %v626
          %v662 = vmul.f32 %v658, %v627
          %v663 = vmul.f32 %v658, %v628
          %v664 = vmul.f32 %v658, %v629
          %v665 = vmul.f32 %v658, %v630
          %v666 = vmul.f32 %v658, %v631
          %v667 = vmul.f32 %v658, %v632
          %v668 = vmul.f32 %v658, %v633
          %v669 = vmul.f32 %v658, %v634
          %v670 = vmul.f32 %v658, %v635
          %v671 = vmul.f32 %v658, %v636
          %v672 = vmul.f32 %v658, %v637
          %v673 = vmul.f32 %v658, %v638
          %v674 = vmul.f32 %v658, %v639
          %v675 = vadd.f32 %v641, %v659
          %v676 = vadd.f32 %v642, %v660
          %v677 = vadd.f32 %v643, %v661
          %v678 = vadd.f32 %v644, %v662
          %v679 = vadd.f32 %v645, %v663
          %v680 = vadd.f32 %v646, %v664
          %v681 = vadd.f32 %v647, %v665
          %v682 = vadd.f32 %v648, %v666
          %v683 = vadd.f32 %v649, %v667
          %v684 = vadd.f32 %v650, %v668
          %v685 = vadd.f32 %v651, %v669
          %v686 = vadd.f32 %v652, %v670
          %v687 = vadd.f32 %v653, %v671
          %v688 = vadd.f32 %v654, %v672
          %v689 = vadd.f32 %v655, %v673
          %v690 = vadd.f32 %v656, %v674
          %691 = vst [vmem:[%s640] sm:$0xff] %v675
          %692 = vst [vmem:[%s640 + $0x8] sm:$0xff] %v676
          %693 = vst [vmem:[%s640 + $0x10] sm:$0xff] %v677
          %694 = vst [vmem:[%s640 + $0x18] sm:$0xff] %v678
          %695 = vst [vmem:[%s640 + $0x20] sm:$0xff] %v679
          %696 = vst [vmem:[%s640 + $0x28] sm:$0xff] %v680
          %697 = vst [vmem:[%s640 + $0x30] sm:$0xff] %v681
          %698 = vst [vmem:[%s640 + $0x38] sm:$0xff] %v682
          %699 = vst [vmem:[%s640 + $0x40] sm:$0xff] %v683
          %700 = vst [vmem:[%s640 + $0x48] sm:$0xff] %v684
          %701 = vst [vmem:[%s640 + $0x50] sm:$0xff] %v685
          %702 = vst [vmem:[%s640 + $0x58] sm:$0xff] %v686
          %703 = vst [vmem:[%s640 + $0x60] sm:$0xff] %v687
          %704 = vst [vmem:[%s640 + $0x68] sm:$0xff] %v688
          %705 = vst [vmem:[%s640 + $0x70] sm:$0xff] %v689
          %706 = vst [vmem:[%s640 + $0x78] sm:$0xff] %v690
          %v707 = vmul.f32 %v391, %v624
          %v708 = vmul.f32 %v392, %v625
          %v709 = vmul.f32 %v393, %v626
          %v710 = vmul.f32 %v394, %v627
          %v711 = vmul.f32 %v395, %v628
          %v712 = vmul.f32 %v396, %v629
          %v713 = vmul.f32 %v397, %v630
          %v714 = vmul.f32 %v398, %v631
          %v715 = vmul.f32 %v399, %v632
          %v716 = vmul.f32 %v400, %v633
          %v717 = vmul.f32 %v401, %v634
          %v718 = vmul.f32 %v402, %v635
          %v719 = vmul.f32 %v403, %v636
          %v720 = vmul.f32 %v404, %v637
          %v721 = vmul.f32 %v405, %v638
          %v722 = vmul.f32 %v406, %v639
          %v723 = vpack.c.bf16 %v708, %v707
          %v724 = vpack.c.bf16 %v710, %v709
          %v725 = vpack.c.bf16 %v712, %v711
          %v726 = vpack.c.bf16 %v714, %v713
          %v727 = vpack.c.bf16 %v716, %v715
          %v728 = vpack.c.bf16 %v718, %v717
          %v729 = vpack.c.bf16 %v720, %v719
          %v730 = vpack.c.bf16 %v722, %v721
          %s731 = sshra.s32 %s288, 4
          %s732 = sand.u32 %s288, 15
          %s733 = smul.u32 %s289, 8
          %s734 = sadd.s32 %s731, %s733
          %s735 = smul.addr %s734, 8
          %s736 = scalar_lea.vmem [#allocation2], %s735
          %737 = vst [vmem:[%s736] sm:$0xff] %v723
          %738 = vst [vmem:[%s736 + $0x8] sm:$0xff] %v724
          %739 = vst [vmem:[%s736 + $0x10] sm:$0xff] %v725
          %740 = vst [vmem:[%s736 + $0x18] sm:$0xff] %v726
          %741 = vst [vmem:[%s736 + $0x20] sm:$0xff] %v727
          %742 = vst [vmem:[%s736 + $0x28] sm:$0xff] %v728
          %743 = vst [vmem:[%s736 + $0x30] sm:$0xff] %v729
          %744 = vst [vmem:[%s736 + $0x38] sm:$0xff] %v730
        $region56: #{tpu_custom_call.1} parent=35 // pred_fallthru
          _
        %p745 = scmp.eq.s32.totalorder %s31, 3
        // Predicated region
        $region57: #{tpu_custom_call.1} parent=35 // pred_check
          %p746 = pneg %p745
        $region58: #{tpu_custom_call.1} parent=35 // pred_check_branch
          %748 = sbr.rel (%p746) target = $region60
        $region59: #{tpu_custom_call.1} parent=35 // pred_region
          %s749 = scalar_lea.vmem [#allocation3], %s288
          %v750 = vld [vmem:[%s749] sm:$0xff]
          %v751 = vld [vmem:[%s749 + $0x8] sm:$0xff]
          %v752 = vld [vmem:[%s749 + $0x10] sm:$0xff]
          %v753 = vld [vmem:[%s749 + $0x18] sm:$0xff]
          %v754 = vld [vmem:[%s749 + $0x20] sm:$0xff]
          %v755 = vld [vmem:[%s749 + $0x28] sm:$0xff]
          %v756 = vld [vmem:[%s749 + $0x30] sm:$0xff]
          %v757 = vld [vmem:[%s749 + $0x38] sm:$0xff]
          %v758 = vld [vmem:[%s749 + $0x40] sm:$0xff]
          %v759 = vld [vmem:[%s749 + $0x48] sm:$0xff]
          %v760 = vld [vmem:[%s749 + $0x50] sm:$0xff]
          %v761 = vld [vmem:[%s749 + $0x58] sm:$0xff]
          %v762 = vld [vmem:[%s749 + $0x60] sm:$0xff]
          %v763 = vld [vmem:[%s749 + $0x68] sm:$0xff]
          %v764 = vld [vmem:[%s749 + $0x70] sm:$0xff]
          %v765 = vld [vmem:[%s749 + $0x78] sm:$0xff]
          %v766 = vpack.c.bf16 %v751, %v750
          %v767 = vpack.c.bf16 %v753, %v752
          %v768 = vpack.c.bf16 %v755, %v754
          %v769 = vpack.c.bf16 %v757, %v756
          %v770 = vpack.c.bf16 %v759, %v758
          %v771 = vpack.c.bf16 %v761, %v760
          %v772 = vpack.c.bf16 %v763, %v762
          %v773 = vpack.c.bf16 %v765, %v764
          %v774 = vld [vmem:[#allocation11] sm:$0xf]
          %v775 = vld [vmem:[#allocation11 + $0x4] sm:$0xf]
          %v776 = vld [vmem:[#allocation11 + $0x8] sm:$0xf]
          %v777 = vld [vmem:[#allocation11 + $0xc] sm:$0xf]
          %v778 = vld [vmem:[#allocation11 + $0x10] sm:$0xf]
          %v779 = vld [vmem:[#allocation11 + $0x14] sm:$0xf]
          %v780 = vld [vmem:[#allocation11 + $0x18] sm:$0xf]
          %v781 = vld [vmem:[#allocation11 + $0x1c] sm:$0xf]
          %v782 = vld [vmem:[#allocation11 + $0x20] sm:$0xf]
          %v783 = vld [vmem:[#allocation11 + $0x24] sm:$0xf]
          %v784 = vld [vmem:[#allocation11 + $0x28] sm:$0xf]
          %v785 = vld [vmem:[#allocation11 + $0x2c] sm:$0xf]
          %v786 = vld [vmem:[#allocation11 + $0x30] sm:$0xf]
          %v787 = vld [vmem:[#allocation11 + $0x34] sm:$0xf]
          %v788 = vld [vmem:[#allocation11 + $0x38] sm:$0xf]
          %v789 = vld [vmem:[#allocation11 + $0x3c] sm:$0xf]
          %v790 = vld [vmem:[%s4] sm:$0x1]
          %v792 = vlaneseq
          %v793 = vshrl.u32 %v792, 7
          %v794 = vsub.s32 0, %v793
          %v795 = vrot.slane %v790, %v794
          %v813 = vunpack.c.l.b16 %v774
          %v814 = vunpack.c.l.b16 %v775
          %v815 = vunpack.c.l.b16 %v776
          %v816 = vunpack.c.l.b16 %v777
          %v817 = vunpack.c.l.b16 %v778
          %v818 = vunpack.c.l.b16 %v779
          %v819 = vunpack.c.l.b16 %v780
          %v820 = vunpack.c.l.b16 %v781
          %v821 = vunpack.c.l.b16 %v782
          %v822 = vunpack.c.l.b16 %v783
          %v823 = vunpack.c.l.b16 %v784
          %v824 = vunpack.c.l.b16 %v785
          %v825 = vunpack.c.l.b16 %v786
          %v826 = vunpack.c.l.b16 %v787
          %v827 = vunpack.c.l.b16 %v788
          %v828 = vunpack.c.l.b16 %v789
          %v829 = vpack.c.b16 %v814, %v813
          %v830 = vpack.c.b16 %v816, %v815
          %v831 = vpack.c.b16 %v818, %v817
          %v832 = vpack.c.b16 %v820, %v819
          %v833 = vpack.c.b16 %v822, %v821
          %v834 = vpack.c.b16 %v824, %v823
          %v835 = vpack.c.b16 %v826, %v825
          %v836 = vpack.c.b16 %v828, %v827
          %845 = vmatprep.subr.bf16.mxu0 0
          %846 = vmatpush1.bf16.msra.mxu0 %v829
          %847 = vmatprep.subr.bf16.mxu0 0
          %848 = vmatpush1.bf16.msra.mxu0 %v830
          %849 = vmatprep.subr.bf16.mxu0 0
          %850 = vmatpush1.bf16.msra.mxu0 %v831
          %851 = vmatprep.subr.bf16.mxu0 0
          %852 = vmatpush1.bf16.msra.mxu0 %v832
          %853 = vmatprep.subr.bf16.mxu0 0
          %854 = vmatpush1.bf16.msra.mxu0 %v833
          %855 = vmatprep.subr.bf16.mxu0 0
          %856 = vmatpush1.bf16.msra.mxu0 %v834
          %857 = vmatprep.subr.bf16.mxu0 0
          %858 = vmatpush1.bf16.msra.mxu0 %v835
          %859 = vmatprep.subr.bf16.mxu0 0
          %860 = vmatpush1.bf16.msra.mxu0 %v836
          %861 = vmatprep.subr.bf16.mxu0 0
          %862 = vmatpush1.bf16.msra.mxu0 0
          %863 = vmatprep.subr.bf16.mxu0 0
          %864 = vmatpush1.bf16.msra.mxu0 0
          %865 = vmatprep.subr.bf16.mxu0 0
          %866 = vmatpush1.bf16.msra.mxu0 0
          %867 = vmatprep.subr.bf16.mxu0 0
          %868 = vmatpush1.bf16.msra.mxu0 0
          %869 = vmatprep.subr.bf16.mxu0 0
          %870 = vmatpush1.bf16.msra.mxu0 0
          %871 = vmatprep.subr.bf16.mxu0 0
          %872 = vmatpush1.bf16.msra.mxu0 0
          %873 = vmatprep.subr.bf16.mxu0 0
          %874 = vmatpush1.bf16.msra.mxu0 0
          %875 = vmatprep.subr.bf16.mxu0 0
          %876 = vmatpush1.bf16.msra.mxu0 0
          %877 = vmatprep.mubr.bf16.mxu0 0
          %878 = vmatmul.mubr.bf16.gmra.mrb[0].mxu0 %v766
          %v879 = vpop.f32.mrb[0].mxu0
          %v880 = vadd.f32 %v795, %v879
          %v881 = vpop.f32.mrb[0].mxu0
          %v882 = vpop.f32.mrb[0].mxu0
          %v883 = vadd.f32 %v795, %v882
          %v884 = vpop.f32.mrb[0].mxu0
          %885 = vmatprep.mubr.bf16.mxu0 0
          %886 = vmatmul.mubr.bf16.gmra.mrb[0].mxu0 %v767
          %v887 = vpop.f32.mrb[0].mxu0
          %v888 = vadd.f32 %v795, %v887
          %v889 = vpop.f32.mrb[0].mxu0
          %v890 = vpop.f32.mrb[0].mxu0
          %v891 = vadd.f32 %v795, %v890
          %v892 = vpop.f32.mrb[0].mxu0
          %893 = vmatprep.mubr.bf16.mxu0 0
          %894 = vmatmul.mubr.bf16.gmra.mrb[0].mxu0 %v768
          %v895 = vpop.f32.mrb[0].mxu0
          %v896 = vadd.f32 %v795, %v895
          %v897 = vpop.f32.mrb[0].mxu0
          %v898 = vpop.f32.mrb[0].mxu0
          %v899 = vadd.f32 %v795, %v898
          %v900 = vpop.f32.mrb[0].mxu0
          %901 = vmatprep.mubr.bf16.mxu0 0
          %902 = vmatmul.mubr.bf16.gmra.mrb[0].mxu0 %v769
          %v903 = vpop.f32.mrb[0].mxu0
          %v904 = vadd.f32 %v795, %v903
          %v905 = vpop.f32.mrb[0].mxu0
          %v906 = vpop.f32.mrb[0].mxu0
          %v907 = vadd.f32 %v795, %v906
          %v908 = vpop.f32.mrb[0].mxu0
          %909 = vmatprep.mubr.bf16.mxu0 0
          %910 = vmatmul.mubr.bf16.gmra.mrb[0].mxu0 %v770
          %v911 = vpop.f32.mrb[0].mxu0
          %v912 = vadd.f32 %v795, %v911
          %v913 = vpop.f32.mrb[0].mxu0
          %v914 = vpop.f32.mrb[0].mxu0
          %v915 = vadd.f32 %v795, %v914
          %v916 = vpop.f32.mrb[0].mxu0
          %917 = vmatprep.mubr.bf16.mxu0 0
          %918 = vmatmul.mubr.bf16.gmra.mrb[0].mxu0 %v771
          %v919 = vpop.f32.mrb[0].mxu0
          %v920 = vadd.f32 %v795, %v919
          %v921 = vpop.f32.mrb[0].mxu0
          %v922 = vpop.f32.mrb[0].mxu0
          %v923 = vadd.f32 %v795, %v922
          %v924 = vpop.f32.mrb[0].mxu0
          %925 = vmatprep.mubr.bf16.mxu0 0
          %926 = vmatmul.mubr.bf16.gmra.mrb[0].mxu0 %v772
          %v927 = vpop.f32.mrb[0].mxu0
          %v928 = vadd.f32 %v795, %v927
          %v929 = vpop.f32.mrb[0].mxu0
          %v930 = vpop.f32.mrb[0].mxu0
          %v931 = vadd.f32 %v795, %v930
          %v932 = vpop.f32.mrb[0].mxu0
          %933 = vmatprep.mubr.bf16.mxu0 0
          %934 = vmatmul.mubr.bf16.gmra.mrb[0].mxu0 %v773
          %v935 = vpop.f32.mrb[0].mxu0
          %v936 = vadd.f32 %v795, %v935
          %v937 = vpop.f32.mrb[0].mxu0
          %v938 = vpop.f32.mrb[0].mxu0
          %v939 = vadd.f32 %v795, %v938
          %v940 = vpop.f32.mrb[0].mxu0
          %941 = vdwg.mxu0
          %942 = vst [vmem:[%s279] sm:$0xff] %v880
          %943 = vst [vmem:[%s279 + $0x8] sm:$0xff] %v883
          %944 = vst [vmem:[%s279 + $0x10] sm:$0xff] %v888
          %945 = vst [vmem:[%s279 + $0x18] sm:$0xff] %v891
          %946 = vst [vmem:[%s279 + $0x20] sm:$0xff] %v896
          %947 = vst [vmem:[%s279 + $0x28] sm:$0xff] %v899
          %948 = vst [vmem:[%s279 + $0x30] sm:$0xff] %v904
          %949 = vst [vmem:[%s279 + $0x38] sm:$0xff] %v907
          %950 = vst [vmem:[%s279 + $0x40] sm:$0xff] %v912
          %951 = vst [vmem:[%s279 + $0x48] sm:$0xff] %v915
          %952 = vst [vmem:[%s279 + $0x50] sm:$0xff] %v920
          %953 = vst [vmem:[%s279 + $0x58] sm:$0xff] %v923
          %954 = vst [vmem:[%s279 + $0x60] sm:$0xff] %v928
          %955 = vst [vmem:[%s279 + $0x68] sm:$0xff] %v931
          %956 = vst [vmem:[%s279 + $0x70] sm:$0xff] %v936
          %957 = vst [vmem:[%s279 + $0x78] sm:$0xff] %v939
        $region60: #{tpu_custom_call.1} parent=35 // pred_fallthru
          _
        %s958 = sand.u32 %s149, 1
        %s959 = scalar_lea.sflag [#allocation8], %s958
        %s960 = sand.u32 %s149, 1
        %s961 = smul.addr %s960, 128
        %s962 = scalar_lea.vmem [#allocation12], %s961
        // Predicated region
        $region61: #{tpu_custom_call.1} parent=35 // pred_check
          %p963 = pneg %p159
        $region62: #{tpu_custom_call.1} parent=35 // pred_check_branch
          %965 = sbr.rel (%p963) target = $region64
        $region63: #{tpu_custom_call.1} parent=35 // pred_region
          %p966 = scmp.eq.s32.totalorder %s31, 3
          %s967 = scalar_select %p966, %s32, 0
          %s968 = smul.u32 16, %s967
          %s970 = ssub.s32 2048, 2048
          %971 = vsyncadd %s959, %s970
          %s972 = smul.addr %s968, 128
          %s973 = scalar_lea.hbm %s5, %s972
          %s974 = sshll.u32 %s962, 4
          %s975 = int_to_ptr.vmem [resolvable:$true] %s974
          %980 = dma.vmem_to_hbm [thread:$0]  %s975, 2048, %s973, %s959, 128, 128, 8
        $region64: #{tpu_custom_call.1} parent=35 // pred_fallthru
          _
      $region36: #{tpu_custom_call.1} parent=5 // pred_fallthru
        _
      %p981 = scmp.le.s32.totalorder 2, %s22
      // Predicated region
      $region65: #{tpu_custom_call.1} parent=5 // pred_check
        %p982 = pneg %p981
      $region66: #{tpu_custom_call.1} parent=5 // pred_check_branch
        %984 = sbr.rel (%p982) target = $region68
      $region67: #{tpu_custom_call.1} parent=5 // pred_region
        %s985 = ssub.s32 %s22, 2
        // Predicated region
        $region69: #{tpu_custom_call.1} parent=67 // pred_check
          %p986 = pneg %p165
        $region70: #{tpu_custom_call.1} parent=67 // pred_check_branch
          %988 = sbr.rel (%p986) target = $region72
        $region71: #{tpu_custom_call.1} parent=67 // pred_region
          %s989 = sand.u32 %s150, 1
          %s990 = scalar_lea.sflag [#allocation8], %s989
          %s991 = sand.u32 %s150, 1
          %s992 = smul.addr %s991, 128
          %s993 = scalar_lea.vmem [#allocation12], %s992
          %994 = dma.done %s990, 2048
        $region72: #{tpu_custom_call.1} parent=67 // pred_fallthru
          _
      $region68: #{tpu_custom_call.1} parent=5 // pred_fallthru
        _
    $region6: #{tpu_custom_call.1} parent=1 // loop_footer
      %s26 = sadd.s32 1, %s22
    $region7: #{tpu_custom_call.1} parent=1 // loop_footer_branch
      %21 = sbr.rel target = $region3
    $region8: #{tpu_custom_call.1} parent=1 // loop_exit
      _
    %995 = vsyncpa [#allocation7], 1
    %s996 = scalar_lea.sflag [#allocation7], 1
    %997 = vsyncpa %s996, 1
    %998 = vsyncpa [#allocation10], 1
    %s999 = scalar_lea.sflag [#allocation10], 1
    %1000 = vsyncpa %s999, 1
    %1001 = vsyncpa [#allocation8], 1
    %s1002 = scalar_lea.sflag [#allocation8], 1
    %1003 = vsyncpa %s1002, 1

</llo_original>
